<compile_context>
chip_gen: v6e
topology: v6e:2x2x1
jax: 0.10.0
libtpu: 0.0.40
codegen_flags: <defaults>
</compile_context>

<pallas_src>
import numpy as np
import jax
import jax.numpy as jnp
from jax.experimental import pallas as pl
from jax.experimental.pallas import tpu as pltpu

# highest-precision f32 matmuls everywhere (reference, fold, and in-kernel dots)
jax.config.update("jax_default_matmul_precision", "highest")

# ---------------- configuration (small, self-consistent shapes) ----------------
B = 2
IN_DIM = 1
NUM_NODES = 8
BACKCAST_LEN = 12
FORECAST_LEN = 12
SEQ_LENGTH = 12
NHID = 4
THETAS_DIM = FORECAST_LEN          # nb_harmonics=None -> thetas_dim = forecast_length
K0 = BACKCAST_LEN * IN_DIM         # flattened per-node input features
WTOT = BACKCAST_LEN + FORECAST_LEN  # fused basis width: [backcast | forecast]

# packed constant-slab layout (rows)
_ROW_B1 = K0                        # bias row for w1
_ROW_WF = K0 + 1                    # start of W_fold rows
_ROW_BF = K0 + 1 + NHID             # folded bias row
_SLAB_ROWS = K0 + NHID + 2


# ---------------- basis construction (matches reference numpy code) ----------------
def linear_space(backcast_length, forecast_length):
    ls = np.arange(-backcast_length, forecast_length, 1) / forecast_length
    b_ls = np.abs(np.flip(ls[:backcast_length]))
    f_ls = ls[backcast_length:]
    return b_ls, f_ls


def seasonality_basis(t, p):
    p1, p2 = (p // 2, p // 2) if p % 2 == 0 else (p // 2, p // 2 + 1)
    s1 = np.stack([np.cos(2 * np.pi * i * t) for i in range(p1)])
    s2 = np.stack([np.sin(2 * np.pi * i * t) for i in range(p2)])
    return np.concatenate([s1, s2]).astype(np.float32)        # (p, len(t))


# ---------------- weight folding + operand packing (done once, outside kernel) -----
def fold_params(params, basis_cat):
    """Fold the whole post-ReLU linear chain into (W_fold, b_fold) and pack all
    constants (w1, b1, W_fold, b_fold) into ONE (K0+NHID+2, WTOT) f32 slab."""
    w1 = params["corex_w1"]                                      # (K0, NHID)
    b1 = params["corex_b1"]                                      # (NHID,)
    w_fold = params["corex_w2"] @ params["theta_w"] @ basis_cat  # (NHID, WTOT)
    b_fold = (params["corex_b2"] @ params["theta_w"]
              + params["theta_b"]) @ basis_cat                   # (WTOT,)
    slab = jnp.zeros((_SLAB_ROWS, WTOT), jnp.float32)
    slab = slab.at[:K0, :NHID].set(w1)
    slab = slab.at[_ROW_B1, :NHID].set(b1)
    slab = slab.at[_ROW_WF:_ROW_WF + NHID, :].set(w_fold)
    slab = slab.at[_ROW_BF, :].set(b_fold)
    return slab


# ---------------- fused Pallas kernel: full SeasonalityBlock forward ----------------
def _seasonality_block_kernel(x_ref, c_ref, o_ref):
    # TODO(synk): CoRex (Graph-WaveNet style submodule) is not defined in the
    # provided source; stand-in = flatten-time dense -> ReLU producing the same
    # (B, seq_length, V, 1)-equivalent hidden state.
    c = c_ref[...]
    w1 = c[:K0, :NHID]
    b1 = c[_ROW_B1:_ROW_B1 + 1, :NHID]
    w_fold = c[_ROW_WF:_ROW_WF + NHID, :]
    b_fold = c[_ROW_BF:_ROW_BF + 1, :]
    h = jnp.maximum(
        jnp.dot(x_ref[...], w1, preferred_element_type=jnp.float32) + b1, 0.0)
    o_ref[...] = jnp.dot(h, w_fold, preferred_element_type=jnp.float32) + b_fold


def seasonality_block_forward(x, const_slab):
    """x: (B, in_dim, V, backcast_len) -> (backcast (B,1,V,Lb), forecast (B,1,V,Lf))."""
    Bn, Cin, V, Lb = x.shape
    M = Bn * V
    # single channels-last flatten of the input (all other glue is pure reshape)
    xf = jnp.transpose(x, (0, 2, 3, 1)).reshape(M, Lb * Cin)

    flops = 2 * M * (K0 * NHID + NHID * WTOT)
    bytes_accessed = 4 * (M * K0 + const_slab.size + M * WTOT)

    out = pl.pallas_call(
        _seasonality_block_kernel,
        out_shape=jax.ShapeDtypeStruct((M, WTOT), jnp.float32),
        # no grid: one full-array-block invocation, no single-step pipeline machinery
        in_specs=[pl.BlockSpec(memory_space=pltpu.MemorySpace.VMEM),
                  pl.BlockSpec(memory_space=pltpu.MemorySpace.VMEM)],
        out_specs=pl.BlockSpec(memory_space=pltpu.MemorySpace.VMEM),
        cost_estimate=pl.CostEstimate(flops=flops, transcendentals=0,
                                      bytes_accessed=bytes_accessed),
    )(xf, const_slab)

    back_f = out[:, :BACKCAST_LEN]                             # (M, Lb)
    fore_f = out[:, BACKCAST_LEN:]                             # (M, Lf)
    # seasonality_model -> (B, W, V, 1); .transpose(1,3) -> (B, 1, V, W).
    # With the trailing l==1 axis this is exactly a reshape of the flat output.
    backcast = back_f.reshape(Bn, V, BACKCAST_LEN)[:, None, :, :]
    forecast = fore_f.reshape(Bn, V, FORECAST_LEN)[:, None, :, :]
    return backcast, forecast


# ---------------- pure-JAX reference (unfolded, for correctness check) -------------
def reference_forward(x, params, s_b, s_f):
    Bn, Cin, V, Lb = x.shape
    xf = jnp.transpose(x, (0, 2, 3, 1)).reshape(Bn * V, Lb * Cin)
    h = jnp.maximum(xf @ params["corex_w1"] + params["corex_b1"], 0.0)
    z = h @ params["corex_w2"] + params["corex_b2"]            # (B*V, seq)
    # (B, seq, V, 1)  == CoRex output layout
    zn = jnp.transpose(z.reshape(Bn, V, SEQ_LENGTH), (0, 2, 1))[..., None]
    # shared theta_b_fc == theta_f_fc 1x1 conv:  (B, thetas_dim, V, 1)
    thetas = jnp.einsum("ncvl,co->novl", zn, params["theta_w"]) \
        + params["theta_b"][None, :, None, None]
    backcast = jnp.einsum("ncvl,cw->nwvl", thetas, s_b)
    forecast = jnp.einsum("ncvl,cw->nwvl", thetas, s_f)
    return (jnp.transpose(backcast, (0, 3, 2, 1)),
            jnp.transpose(forecast, (0, 3, 2, 1)))


# ---------------- deterministic parameter init ----------------
def init_params(key):
    ks = jax.random.split(key, 6)

    def nrm(k, shape):
        return 0.1 * jax.random.normal(k, shape, jnp.float32)

    return dict(
        # CoRex stand-in MLP (flatten-time -> nhid -> seq_length)
        corex_w1=nrm(ks[0], (BACKCAST_LEN * IN_DIM, NHID)),
        corex_b1=nrm(ks[1], (NHID,)),
        corex_w2=nrm(ks[2], (NHID, SEQ_LENGTH)),
        corex_b2=nrm(ks[3], (SEQ_LENGTH,)),
        # shared theta_b_fc == theta_f_fc 1x1 conv (share_thetas=True in the
        # PyTorch SeasonalityBlock), stored in (C_in, C_out) matmul layout
        theta_w=nrm(ks[4], (SEQ_LENGTH, THETAS_DIM)),
        theta_b=nrm(ks[5], (THETAS_DIM,)),
    )


if __name__ == "__main__":
    key = jax.random.PRNGKey(0)
    pkey, xkey = jax.random.split(key)
    params = init_params(pkey)

    b_ls, f_ls = linear_space(BACKCAST_LEN, FORECAST_LEN)
    s_b = jnp.asarray(seasonality_basis(b_ls, THETAS_DIM))    # (thetas_dim, Lb)
    s_f = jnp.asarray(seasonality_basis(f_ls, THETAS_DIM))    # (thetas_dim, Lf)
    basis_cat = jnp.concatenate([s_b, s_f], axis=1)           # (thetas_dim, Lb+Lf)

    # fold + pack constants once (weights only, no input dependence)
    const_slab = jax.block_until_ready(fold_params(params, basis_cat))

    x = jax.random.normal(xkey, (B, IN_DIM, NUM_NODES, BACKCAST_LEN), jnp.float32)

    fwd = jax.jit(seasonality_block_forward)
    backcast_out, forecast_out = fwd(x, const_slab)
    jax.block_until_ready((backcast_out, forecast_out))

    assert backcast_out.shape == (B, 1, NUM_NODES, BACKCAST_LEN)
    assert forecast_out.shape == (B, 1, NUM_NODES, FORECAST_LEN)

    ref_b, ref_f = reference_forward(x, params, s_b, s_f)
    # fp32, highest-precision matmuls: folded vs unfolded order agrees to ~1e-7
    assert jnp.allclose(backcast_out, ref_b, atol=1e-5, rtol=1e-5)
    assert jnp.allclose(forecast_out, ref_f, atol=1e-5, rtol=1e-5)

    print("KERNEL_OK")
</pallas_src>

<mosaic_0001>
module attributes {stable_mosaic.version = 11 : i64} {
  func.func @_seasonality_block_kernel(%arg0: memref<16x12xf32, #tpu.memory_space<vmem>>, %arg1: memref<18x24xf32, #tpu.memory_space<vmem>>, %arg2: memref<16x24xf32, #tpu.memory_space<vmem>>) attributes {dimension_semantics = [], scalar_prefetch = 0 : i64, scratch_operands = 0 : i64, tpu.core_type = #tpu.core_type<tc>} {
    %c0 = arith.constant 0 : index
    %c0_0 = arith.constant 0 : index
    %0 = vector.load %arg1[%c0, %c0_0] : memref<18x24xf32, #tpu.memory_space<vmem>>, vector<18x24xf32>
    %1 = vector.extract_strided_slice %0 {offsets = [0, 0], sizes = [12, 4], strides = [1, 1]} : vector<18x24xf32> to vector<12x4xf32>
    %2 = vector.extract_strided_slice %0 {offsets = [12, 0], sizes = [1, 4], strides = [1, 1]} : vector<18x24xf32> to vector<1x4xf32>
    %3 = vector.extract_strided_slice %0 {offsets = [13, 0], sizes = [4, 24], strides = [1, 1]} : vector<18x24xf32> to vector<4x24xf32>
    %4 = vector.extract_strided_slice %0 {offsets = [17, 0], sizes = [1, 24], strides = [1, 1]} : vector<18x24xf32> to vector<1x24xf32>
    %c0_1 = arith.constant 0 : index
    %c0_2 = arith.constant 0 : index
    %5 = vector.load %arg0[%c0_1, %c0_2] : memref<16x12xf32, #tpu.memory_space<vmem>>, vector<16x12xf32>
    %cst = arith.constant dense<0.000000e+00> : vector<16x4xf32>
    %6 = tpu.matmul %5, %1, %cst {dimension_numbers = #tpu.dot_dimension_numbers<[1], [0], [0], [1], [0, 0, 1, 1], [], []>, precision = #tpu.contract_precision<fp32>} : vector<16x12xf32>, vector<12x4xf32>, vector<16x4xf32> -> vector<16x4xf32>
    %7 = vector.broadcast %2 : vector<1x4xf32> to vector<16x4xf32>
    %8 = arith.addf %6, %7 : vector<16x4xf32>
    %cst_3 = arith.constant 0.000000e+00 : f32
    %9 = vector.broadcast %cst_3 : f32 to vector<16x4xf32>
    %10 = arith.maximumf %8, %9 : vector<16x4xf32>
    %cst_4 = arith.constant dense<0.000000e+00> : vector<16x24xf32>
    %11 = tpu.matmul %10, %3, %cst_4 {dimension_numbers = #tpu.dot_dimension_numbers<[1], [0], [0], [1], [0, 0, 1, 1], [], []>, precision = #tpu.contract_precision<fp32>} : vector<16x4xf32>, vector<4x24xf32>, vector<16x24xf32> -> vector<16x24xf32>
    %12 = vector.broadcast %4 : vector<1x24xf32> to vector<16x24xf32>
    %13 = arith.addf %11, %12 : vector<16x24xf32>
    %c0_5 = arith.constant 0 : index
    %c0_6 = arith.constant 0 : index
    %14 = vector.load %arg2[%c0_5, %c0_6] : memref<16x24xf32, #tpu.memory_space<vmem>>, vector<16x24xf32>
    tpu.vector_store %arg2[%c0_5, %c0_6], %13 {strides = array<i32>} : memref<16x24xf32, #tpu.memory_space<vmem>>, vector<16x24xf32>,
    return
  }
}

</mosaic_0001>

<llo_original>
// kernel: seasonality_block_forward.1
$region0: #{seasonality_block_forward.1}
  #allocation0 [shape = 'u32[]', space=smem, size = 0x4, offset = 0x4, fixed_abs, tag = 'smem constant byte address 0x4 - core index']
  #allocation1 [shape = 'u32[144,128]{1,0:T(1,128)}', space=vmem, size = 0x12000, scoped, tag = 'internal scratch']
  %s0 = inlined_call_operand.hbm [shape: f32[16,12], index: 0, kind: input, shape index: {}]
  %s1 = inlined_call_operand.hbm [shape: f32[18,24], index: 1, kind: input, shape index: {}]
  %s2 = inlined_call_operand.vmem [shape: f32[16,24], index: 2, kind: output, shape index: {}]
  %s3 = sld [smem:[#allocation0]]
  $region26: #{seasonality_block_forward.1} parent=0
    _
  %s5 = ssub.s32 1, %s3
  %s6 = scalar_select 0, %s5, %s3
  $region1: #{seasonality_block_forward.1} parent=0
    #allocation2 [shape = 'u8[8192]{0}', space=vmem, size = 0x2000, scoped, tag = 'input window, operand 0, single buffered']
    #allocation3 [shape = 's32[1]{0}', space=sflag, size = 0x4, scoped, tag = 'scoped memory for seasonality_block_forward.1']
    #allocation4 [shape = 'u8[12288]{0}', space=vmem, size = 0x3000, scoped, tag = 'input window, operand 1, single buffered']
    #allocation5 [shape = 's32[1]{0}', space=sflag, size = 0x4, scoped, tag = 'scoped memory for seasonality_block_forward.1']
    %7 = vsyncpa [#allocation3], 0
    %8 = vsyncpa [#allocation5], 0
    // Predicated region
    $region2: #{seasonality_block_forward.1} parent=1 // pred_check
      _
    $region3: #{seasonality_block_forward.1} parent=1 // pred_check_branch
      %10 = sbr.rel (0) target = $region5
    $region4: #{seasonality_block_forward.1} parent=1 // pred_region
      %s12 = ssub.s32 256, 256
      %13 = vsyncadd [#allocation3], %s12
      %s14 = sshll.u32 [#allocation2], 4
      %s15 = int_to_ptr.vmem [resolvable:$true] %s14
      %20 = dma.hbm_to_vmem [thread:$0]  %s0, 256, %s15, [#allocation3], 128, 128, 8
    $region5: #{seasonality_block_forward.1} parent=1 // pred_fallthru
      _
    // Predicated region
    $region6: #{seasonality_block_forward.1} parent=1 // pred_check
      _
    $region7: #{seasonality_block_forward.1} parent=1 // pred_check_branch
      %22 = sbr.rel (0) target = $region9
    $region8: #{seasonality_block_forward.1} parent=1 // pred_region
      %s24 = ssub.s32 384, 384
      %25 = vsyncadd [#allocation5], %s24
      %s26 = sshll.u32 [#allocation4], 4
      %s27 = int_to_ptr.vmem [resolvable:$true] %s26
      %32 = dma.hbm_to_vmem [thread:$0]  %s1, 384, %s27, [#allocation5], 128, 128, 8
    $region9: #{seasonality_block_forward.1} parent=1 // pred_fallthru
      _
    // Predicated region
    $region10: #{seasonality_block_forward.1} parent=1 // pred_check
      _
    $region11: #{seasonality_block_forward.1} parent=1 // pred_check_branch
      %34 = sbr.rel (0) target = $region13
    $region12: #{seasonality_block_forward.1} parent=1 // pred_region
      %35 = dma.done [#allocation3], 256
    $region13: #{seasonality_block_forward.1} parent=1 // pred_fallthru
      _
    // Predicated region
    $region14: #{seasonality_block_forward.1} parent=1 // pred_check
      _
    $region15: #{seasonality_block_forward.1} parent=1 // pred_check_branch
      %37 = sbr.rel (0) target = $region17
    $region16: #{seasonality_block_forward.1} parent=1 // pred_region
      %38 = dma.done [#allocation5], 384
    $region17: #{seasonality_block_forward.1} parent=1 // pred_fallthru
      _
    %v39 = vld [vmem:[#allocation4] sm:$0xff]
    %v40 = vld [vmem:[#allocation4 + $0x8] sm:$0xff]
    %v41 = vld [vmem:[#allocation4 + $0x10] sm:$0x3]
    %v42 = vld [vmem:[#allocation2] sm:$0xff]
    %v43 = vld [vmem:[#allocation2 + $0x8] sm:$0xff]
    %v44 = vlaneseq
    %v45 = vshrl.u32 %v44, 7
    %v46 = vsub.s32 4, %v45
    %v47 = vrot.slane %v40, %v46
    %vm48 = vcmask 97280
    %v50 = vsel %vm48, %v42, 0
    %v53 = vsel %vm48, %v43, 0
    %vm55 = vcmask 1043456
    %v57 = vsel %vm55, %v40, 0
    %59 = vmatprep.subr.mxu0 0.0
    %60 = vmatpush1.msra.mxu0 0.0
    %61 = vmatprep.subr.mxu0 0.0
    %62 = vmatpush1.msra.mxu0 0.0
    %63 = vmatprep.subr.mxu0 0.0
    %64 = vmatpush1.msra.mxu0 0.0
    %65 = vmatprep.subr.mxu0 0.0
    %66 = vmatpush1.msra.mxu0 0.0
    %67 = vmatprep.subr.mxu0 0.0
    %68 = vmatpush1.msra.mxu0 0.0
    %69 = vmatprep.subr.mxu0 0.0
    %70 = vmatpush1.msra.mxu0 0.0
    %71 = vmatprep.subr.mxu0 0.0
    %72 = vmatpush1.msra.mxu0 0.0
    %73 = vmatprep.subr.mxu0 0.0
    %74 = vmatpush1.msra.mxu0 0.0
    %75 = vmatprep.subr.mxu0 0.0
    %76 = vmatpush1.msra.mxu0 0.0
    %77 = vmatprep.subr.mxu0 0.0
    %78 = vmatpush1.msra.mxu0 0.0
    %79 = vmatprep.subr.mxu0 0.0
    %80 = vmatpush1.msra.mxu0 0.0
    %81 = vmatprep.subr.mxu0 0.0
    %82 = vmatpush1.msra.mxu0 0.0
    %83 = vmatprep.subr.mxu0 0.0
    %84 = vmatpush1.msra.mxu0 0.0
    %85 = vmatprep.subr.mxu0 0.0
    %86 = vmatpush1.msra.mxu0 0.0
    %87 = vmatprep.subr.mxu0 0.0
    %v88 = vand.u32 %v57, 4294901760
    %89 = vmatpush1.msra.mxu0 %v88
    %90 = vmatprep.subr.mxu0 0.0
    %v91 = vand.u32 %v39, 4294901760
    %92 = vmatpush1.msra.mxu0 %v91
    %93 = vmatprep.subr.mxu0 0.0
    %94 = vmatpush2.msra.mxu0 0.0
    %95 = vmatprep.subr.mxu0 0.0
    %96 = vmatpush2.msra.mxu0 0.0
    %97 = vmatprep.subr.mxu0 0.0
    %98 = vmatpush2.msra.mxu0 0.0
    %99 = vmatprep.subr.mxu0 0.0
    %100 = vmatpush2.msra.mxu0 0.0
    %101 = vmatprep.subr.mxu0 0.0
    %102 = vmatpush2.msra.mxu0 0.0
    %103 = vmatprep.subr.mxu0 0.0
    %104 = vmatpush2.msra.mxu0 0.0
    %105 = vmatprep.subr.mxu0 0.0
    %106 = vmatpush2.msra.mxu0 0.0
    %107 = vmatprep.subr.mxu0 0.0
    %108 = vmatpush2.msra.mxu0 0.0
    %109 = vmatprep.subr.mxu0 0.0
    %110 = vmatpush2.msra.mxu0 0.0
    %111 = vmatprep.subr.mxu0 0.0
    %112 = vmatpush2.msra.mxu0 0.0
    %113 = vmatprep.subr.mxu0 0.0
    %114 = vmatpush2.msra.mxu0 0.0
    %115 = vmatprep.subr.mxu0 0.0
    %116 = vmatpush2.msra.mxu0 0.0
    %117 = vmatprep.subr.mxu0 0.0
    %118 = vmatpush2.msra.mxu0 0.0
    %119 = vmatprep.subr.mxu0 0.0
    %120 = vmatpush2.msra.mxu0 0.0
    %121 = vmatprep.subr.mxu0 0.0
    %122 = vmatpush2.msra.mxu0 0.0
    %123 = vmatprep.subr.mxu0 0.0
    %124 = vmatpush2.msra.mxu0 0.0
    %125 = vmatprep.mubr.f32.mxu0 0.0
    %v126 = vand.u32 %v50, 4294901760
    %v127 = vsub.f32 %v50, %v126
    %v128 = vand.u32 %v127, 4294901760
    %v129 = vsub.f32 %v127, %v128
    %v130 = vand.u32 %v129, 4294901760
    %131 = vmatmul.mubr.f32.gmra.mxu0 %v130
    %v132 = vpop.f32.mrf.mxu0
    %v133 = vadd.f32 %v47, %v132
    %v134 = vpop.f32.mrf.mxu0
    %135 = vmatprep.mubr.f32.mxu0 0.0
    %v136 = vand.u32 %v53, 4294901760
    %v137 = vsub.f32 %v53, %v136
    %v138 = vand.u32 %v137, 4294901760
    %v139 = vsub.f32 %v137, %v138
    %v140 = vand.u32 %v139, 4294901760
    %141 = vmatmul.mubr.f32.gmra.mxu0 %v140
    %v142 = vpop.f32.mrf.mxu0
    %v143 = vadd.f32 %v47, %v142
    %v144 = vpop.f32.mrf.mxu0
    %145 = vdwg.mxu0
    %146 = vmatprep.subr.mxu0 0.0
    %147 = vmatpush1.msra.mxu0 0.0
    %148 = vmatprep.subr.mxu0 0.0
    %149 = vmatpush1.msra.mxu0 0.0
    %150 = vmatprep.subr.mxu0 0.0
    %151 = vmatpush1.msra.mxu0 0.0
    %152 = vmatprep.subr.mxu0 0.0
    %153 = vmatpush1.msra.mxu0 0.0
    %154 = vmatprep.subr.mxu0 0.0
    %155 = vmatpush1.msra.mxu0 0.0
    %156 = vmatprep.subr.mxu0 0.0
    %157 = vmatpush1.msra.mxu0 0.0
    %158 = vmatprep.subr.mxu0 0.0
    %159 = vmatpush1.msra.mxu0 0.0
    %160 = vmatprep.subr.mxu0 0.0
    %161 = vmatpush1.msra.mxu0 0.0
    %162 = vmatprep.subr.mxu0 0.0
    %163 = vmatpush1.msra.mxu0 0.0
    %164 = vmatprep.subr.mxu0 0.0
    %165 = vmatpush1.msra.mxu0 0.0
    %166 = vmatprep.subr.mxu0 0.0
    %167 = vmatpush1.msra.mxu0 0.0
    %168 = vmatprep.subr.mxu0 0.0
    %169 = vmatpush1.msra.mxu0 0.0
    %170 = vmatprep.subr.mxu0 0.0
    %171 = vmatpush1.msra.mxu0 0.0
    %172 = vmatprep.subr.mxu0 0.0
    %173 = vmatpush1.msra.mxu0 0.0
    %174 = vmatprep.subr.mxu0 0.0
    %v175 = vand.u32 %v57, 4294901760
    %v176 = vsub.f32 %v57, %v175
    %v177 = vand.u32 %v176, 4294901760
    %v178 = vsub.f32 %v176, %v177
    %v179 = vand.u32 %v178, 4294901760
    %180 = vmatpush1.msra.mxu0 %v179
    %181 = vmatprep.subr.mxu0 0.0
    %v182 = vand.u32 %v39, 4294901760
    %v183 = vsub.f32 %v39, %v182
    %v184 = vand.u32 %v183, 4294901760
    %v185 = vsub.f32 %v183, %v184
    %v186 = vand.u32 %v185, 4294901760
    %187 = vmatpush1.msra.mxu0 %v186
    %188 = vmatprep.subr.mxu0 0.0
    %189 = vmatpush2.msra.mxu0 0.0
    %190 = vmatprep.subr.mxu0 0.0
    %191 = vmatpush2.msra.mxu0 0.0
    %192 = vmatprep.subr.mxu0 0.0
    %193 = vmatpush2.msra.mxu0 0.0
    %194 = vmatprep.subr.mxu0 0.0
    %195 = vmatpush2.msra.mxu0 0.0
    %196 = vmatprep.subr.mxu0 0.0
    %197 = vmatpush2.msra.mxu0 0.0
    %198 = vmatprep.subr.mxu0 0.0
    %199 = vmatpush2.msra.mxu0 0.0
    %200 = vmatprep.subr.mxu0 0.0
    %201 = vmatpush2.msra.mxu0 0.0
    %202 = vmatprep.subr.mxu0 0.0
    %203 = vmatpush2.msra.mxu0 0.0
    %204 = vmatprep.subr.mxu0 0.0
    %205 = vmatpush2.msra.mxu0 0.0
    %206 = vmatprep.subr.mxu0 0.0
    %207 = vmatpush2.msra.mxu0 0.0
    %208 = vmatprep.subr.mxu0 0.0
    %209 = vmatpush2.msra.mxu0 0.0
    %210 = vmatprep.subr.mxu0 0.0
    %211 = vmatpush2.msra.mxu0 0.0
    %212 = vmatprep.subr.mxu0 0.0
    %213 = vmatpush2.msra.mxu0 0.0
    %214 = vmatprep.subr.mxu0 0.0
    %215 = vmatpush2.msra.mxu0 0.0
    %216 = vmatprep.subr.mxu0 0.0
    %217 = vmatpush2.msra.mxu0 0.0
    %218 = vmatprep.subr.mxu0 0.0
    %219 = vmatpush2.msra.mxu0 0.0
    %220 = vmatprep.mubr.f32.mxu0 0.0
    %v221 = vand.u32 %v50, 4294901760
    %222 = vmatmul.mubr.f32.gmra.mxu0 %v221
    %v223 = vpop.f32.mrf.mxu0
    %v224 = vadd.f32 %v133, %v223
    %v225 = vpop.f32.mrf.mxu0
    %226 = vmatprep.mubr.f32.mxu0 0.0
    %v227 = vand.u32 %v53, 4294901760
    %228 = vmatmul.mubr.f32.gmra.mxu0 %v227
    %v229 = vpop.f32.mrf.mxu0
    %v230 = vadd.f32 %v143, %v229
    %v231 = vpop.f32.mrf.mxu0
    %232 = vdwg.mxu0
    %233 = vmatprep.subr.mxu0 0.0
    %234 = vmatpush1.msra.mxu0 0.0
    %235 = vmatprep.subr.mxu0 0.0
    %236 = vmatpush1.msra.mxu0 0.0
    %237 = vmatprep.subr.mxu0 0.0
    %238 = vmatpush1.msra.mxu0 0.0
    %239 = vmatprep.subr.mxu0 0.0
    %240 = vmatpush1.msra.mxu0 0.0
    %241 = vmatprep.subr.mxu0 0.0
    %242 = vmatpush1.msra.mxu0 0.0
    %243 = vmatprep.subr.mxu0 0.0
    %244 = vmatpush1.msra.mxu0 0.0
    %245 = vmatprep.subr.mxu0 0.0
    %246 = vmatpush1.msra.mxu0 0.0
    %247 = vmatprep.subr.mxu0 0.0
    %248 = vmatpush1.msra.mxu0 0.0
    %249 = vmatprep.subr.mxu0 0.0
    %250 = vmatpush1.msra.mxu0 0.0
    %251 = vmatprep.subr.mxu0 0.0
    %252 = vmatpush1.msra.mxu0 0.0
    %253 = vmatprep.subr.mxu0 0.0
    %254 = vmatpush1.msra.mxu0 0.0
    %255 = vmatprep.subr.mxu0 0.0
    %256 = vmatpush1.msra.mxu0 0.0
    %257 = vmatprep.subr.mxu0 0.0
    %258 = vmatpush1.msra.mxu0 0.0
    %259 = vmatprep.subr.mxu0 0.0
    %260 = vmatpush1.msra.mxu0 0.0
    %261 = vmatprep.subr.mxu0 0.0
    %v262 = vand.u32 %v57, 4294901760
    %v263 = vsub.f32 %v57, %v262
    %264 = vmatpush1.msra.mxu0 %v263
    %265 = vmatprep.subr.mxu0 0.0
    %v266 = vand.u32 %v39, 4294901760
    %v267 = vsub.f32 %v39, %v266
    %268 = vmatpush1.msra.mxu0 %v267
    %269 = vmatprep.subr.mxu0 0.0
    %270 = vmatpush2.msra.mxu0 0.0
    %271 = vmatprep.subr.mxu0 0.0
    %272 = vmatpush2.msra.mxu0 0.0
    %273 = vmatprep.subr.mxu0 0.0
    %274 = vmatpush2.msra.mxu0 0.0
    %275 = vmatprep.subr.mxu0 0.0
    %276 = vmatpush2.msra.mxu0 0.0
    %277 = vmatprep.subr.mxu0 0.0
    %278 = vmatpush2.msra.mxu0 0.0
    %279 = vmatprep.subr.mxu0 0.0
    %280 = vmatpush2.msra.mxu0 0.0
    %281 = vmatprep.subr.mxu0 0.0
    %282 = vmatpush2.msra.mxu0 0.0
    %283 = vmatprep.subr.mxu0 0.0
    %284 = vmatpush2.msra.mxu0 0.0
    %285 = vmatprep.subr.mxu0 0.0
    %286 = vmatpush2.msra.mxu0 0.0
    %287 = vmatprep.subr.mxu0 0.0
    %288 = vmatpush2.msra.mxu0 0.0
    %289 = vmatprep.subr.mxu0 0.0
    %290 = vmatpush2.msra.mxu0 0.0
    %291 = vmatprep.subr.mxu0 0.0
    %292 = vmatpush2.msra.mxu0 0.0
    %293 = vmatprep.subr.mxu0 0.0
    %294 = vmatpush2.msra.mxu0 0.0
    %295 = vmatprep.subr.mxu0 0.0
    %296 = vmatpush2.msra.mxu0 0.0
    %297 = vmatprep.subr.mxu0 0.0
    %298 = vmatpush2.msra.mxu0 0.0
    %299 = vmatprep.subr.mxu0 0.0
    %300 = vmatpush2.msra.mxu0 0.0
    %301 = vmatprep.mubr.f32.mxu0 0.0
    %v302 = vand.u32 %v50, 4294901760
    %v303 = vsub.f32 %v50, %v302
    %304 = vmatmul.mubr.f32.gmra.mxu0 %v303
    %v305 = vpop.f32.mrf.mxu0
    %v306 = vadd.f32 %v224, %v305
    %v307 = vpop.f32.mrf.mxu0
    %308 = vmatprep.mubr.f32.mxu0 0.0
    %v309 = vand.u32 %v53, 4294901760
    %v310 = vsub.f32 %v53, %v309
    %311 = vmatmul.mubr.f32.gmra.mxu0 %v310
    %v312 = vpop.f32.mrf.mxu0
    %v313 = vadd.f32 %v230, %v312
    %v314 = vpop.f32.mrf.mxu0
    %315 = vdwg.mxu0
    %316 = vmatprep.subr.mxu0 0.0
    %317 = vmatpush1.msra.mxu0 0.0
    %318 = vmatprep.subr.mxu0 0.0
    %319 = vmatpush1.msra.mxu0 0.0
    %320 = vmatprep.subr.mxu0 0.0
    %321 = vmatpush1.msra.mxu0 0.0
    %322 = vmatprep.subr.mxu0 0.0
    %323 = vmatpush1.msra.mxu0 0.0
    %324 = vmatprep.subr.mxu0 0.0
    %325 = vmatpush1.msra.mxu0 0.0
    %326 = vmatprep.subr.mxu0 0.0
    %327 = vmatpush1.msra.mxu0 0.0
    %328 = vmatprep.subr.mxu0 0.0
    %329 = vmatpush1.msra.mxu0 0.0
    %330 = vmatprep.subr.mxu0 0.0
    %331 = vmatpush1.msra.mxu0 0.0
    %332 = vmatprep.subr.mxu0 0.0
    %333 = vmatpush1.msra.mxu0 0.0
    %334 = vmatprep.subr.mxu0 0.0
    %335 = vmatpush1.msra.mxu0 0.0
    %336 = vmatprep.subr.mxu0 0.0
    %337 = vmatpush1.msra.mxu0 0.0
    %338 = vmatprep.subr.mxu0 0.0
    %339 = vmatpush1.msra.mxu0 0.0
    %340 = vmatprep.subr.mxu0 0.0
    %341 = vmatpush1.msra.mxu0 0.0
    %342 = vmatprep.subr.mxu0 0.0
    %343 = vmatpush1.msra.mxu0 0.0
    %344 = vmatprep.subr.mxu0 0.0
    %v345 = vand.u32 %v57, 4294901760
    %346 = vmatpush1.msra.mxu0 %v345
    %347 = vmatprep.subr.mxu0 0.0
    %v348 = vand.u32 %v39, 4294901760
    %349 = vmatpush1.msra.mxu0 %v348
    %350 = vmatprep.subr.mxu0 0.0
    %351 = vmatpush2.msra.mxu0 0.0
    %352 = vmatprep.subr.mxu0 0.0
    %353 = vmatpush2.msra.mxu0 0.0
    %354 = vmatprep.subr.mxu0 0.0
    %355 = vmatpush2.msra.mxu0 0.0
    %356 = vmatprep.subr.mxu0 0.0
    %357 = vmatpush2.msra.mxu0 0.0
    %358 = vmatprep.subr.mxu0 0.0
    %359 = vmatpush2.msra.mxu0 0.0
    %360 = vmatprep.subr.mxu0 0.0
    %361 = vmatpush2.msra.mxu0 0.0
    %362 = vmatprep.subr.mxu0 0.0
    %363 = vmatpush2.msra.mxu0 0.0
    %364 = vmatprep.subr.mxu0 0.0
    %365 = vmatpush2.msra.mxu0 0.0
    %366 = vmatprep.subr.mxu0 0.0
    %367 = vmatpush2.msra.mxu0 0.0
    %368 = vmatprep.subr.mxu0 0.0
    %369 = vmatpush2.msra.mxu0 0.0
    %370 = vmatprep.subr.mxu0 0.0
    %371 = vmatpush2.msra.mxu0 0.0
    %372 = vmatprep.subr.mxu0 0.0
    %373 = vmatpush2.msra.mxu0 0.0
    %374 = vmatprep.subr.mxu0 0.0
    %375 = vmatpush2.msra.mxu0 0.0
    %376 = vmatprep.subr.mxu0 0.0
    %377 = vmatpush2.msra.mxu0 0.0
    %378 = vmatprep.subr.mxu0 0.0
    %379 = vmatpush2.msra.mxu0 0.0
    %380 = vmatprep.subr.mxu0 0.0
    %381 = vmatpush2.msra.mxu0 0.0
    %382 = vmatprep.mubr.f32.mxu0 0.0
    %v383 = vand.u32 %v50, 4294901760
    %v384 = vsub.f32 %v50, %v383
    %v385 = vand.u32 %v384, 4294901760
    %386 = vmatmul.mubr.f32.gmra.mxu0 %v385
    %v387 = vpop.f32.mrf.mxu0
    %v388 = vadd.f32 %v306, %v387
    %v389 = vpop.f32.mrf.mxu0
    %390 = vmatprep.mubr.f32.mxu0 0.0
    %v391 = vand.u32 %v53, 4294901760
    %v392 = vsub.f32 %v53, %v391
    %v393 = vand.u32 %v392, 4294901760
    %394 = vmatmul.mubr.f32.gmra.mxu0 %v393
    %v395 = vpop.f32.mrf.mxu0
    %v396 = vadd.f32 %v313, %v395
    %v397 = vpop.f32.mrf.mxu0
    %398 = vdwg.mxu0
    %399 = vmatprep.subr.mxu0 0.0
    %400 = vmatpush1.msra.mxu0 0.0
    %401 = vmatprep.subr.mxu0 0.0
    %402 = vmatpush1.msra.mxu0 0.0
    %403 = vmatprep.subr.mxu0 0.0
    %404 = vmatpush1.msra.mxu0 0.0
    %405 = vmatprep.subr.mxu0 0.0
    %406 = vmatpush1.msra.mxu0 0.0
    %407 = vmatprep.subr.mxu0 0.0
    %408 = vmatpush1.msra.mxu0 0.0
    %409 = vmatprep.subr.mxu0 0.0
    %410 = vmatpush1.msra.mxu0 0.0
    %411 = vmatprep.subr.mxu0 0.0
    %412 = vmatpush1.msra.mxu0 0.0
    %413 = vmatprep.subr.mxu0 0.0
    %414 = vmatpush1.msra.mxu0 0.0
    %415 = vmatprep.subr.mxu0 0.0
    %416 = vmatpush1.msra.mxu0 0.0
    %417 = vmatprep.subr.mxu0 0.0
    %418 = vmatpush1.msra.mxu0 0.0
    %419 = vmatprep.subr.mxu0 0.0
    %420 = vmatpush1.msra.mxu0 0.0
    %421 = vmatprep.subr.mxu0 0.0
    %422 = vmatpush1.msra.mxu0 0.0
    %423 = vmatprep.subr.mxu0 0.0
    %424 = vmatpush1.msra.mxu0 0.0
    %425 = vmatprep.subr.mxu0 0.0
    %426 = vmatpush1.msra.mxu0 0.0
    %427 = vmatprep.subr.mxu0 0.0
    %v428 = vand.u32 %v57, 4294901760
    %v429 = vsub.f32 %v57, %v428
    %v430 = vand.u32 %v429, 4294901760
    %431 = vmatpush1.msra.mxu0 %v430
    %432 = vmatprep.subr.mxu0 0.0
    %v433 = vand.u32 %v39, 4294901760
    %v434 = vsub.f32 %v39, %v433
    %v435 = vand.u32 %v434, 4294901760
    %436 = vmatpush1.msra.mxu0 %v435
    %437 = vmatprep.subr.mxu0 0.0
    %438 = vmatpush2.msra.mxu0 0.0
    %439 = vmatprep.subr.mxu0 0.0
    %440 = vmatpush2.msra.mxu0 0.0
    %441 = vmatprep.subr.mxu0 0.0
    %442 = vmatpush2.msra.mxu0 0.0
    %443 = vmatprep.subr.mxu0 0.0
    %444 = vmatpush2.msra.mxu0 0.0
    %445 = vmatprep.subr.mxu0 0.0
    %446 = vmatpush2.msra.mxu0 0.0
    %447 = vmatprep.subr.mxu0 0.0
    %448 = vmatpush2.msra.mxu0 0.0
    %449 = vmatprep.subr.mxu0 0.0
    %450 = vmatpush2.msra.mxu0 0.0
    %451 = vmatprep.subr.mxu0 0.0
    %452 = vmatpush2.msra.mxu0 0.0
    %453 = vmatprep.subr.mxu0 0.0
    %454 = vmatpush2.msra.mxu0 0.0
    %455 = vmatprep.subr.mxu0 0.0
    %456 = vmatpush2.msra.mxu0 0.0
    %457 = vmatprep.subr.mxu0 0.0
    %458 = vmatpush2.msra.mxu0 0.0
    %459 = vmatprep.subr.mxu0 0.0
    %460 = vmatpush2.msra.mxu0 0.0
    %461 = vmatprep.subr.mxu0 0.0
    %462 = vmatpush2.msra.mxu0 0.0
    %463 = vmatprep.subr.mxu0 0.0
    %464 = vmatpush2.msra.mxu0 0.0
    %465 = vmatprep.subr.mxu0 0.0
    %466 = vmatpush2.msra.mxu0 0.0
    %467 = vmatprep.subr.mxu0 0.0
    %468 = vmatpush2.msra.mxu0 0.0
    %469 = vmatprep.mubr.f32.mxu0 0.0
    %v470 = vand.u32 %v50, 4294901760
    %471 = vmatmul.mubr.f32.gmra.mxu0 %v470
    %v472 = vpop.f32.mrf.mxu0
    %v473 = vadd.f32 %v388, %v472
    %v474 = vpop.f32.mrf.mxu0
    %475 = vmatprep.mubr.f32.mxu0 0.0
    %v476 = vand.u32 %v53, 4294901760
    %477 = vmatmul.mubr.f32.gmra.mxu0 %v476
    %v478 = vpop.f32.mrf.mxu0
    %v479 = vadd.f32 %v396, %v478
    %v480 = vpop.f32.mrf.mxu0
    %481 = vdwg.mxu0
    %482 = vmatprep.subr.mxu0 0.0
    %483 = vmatpush1.msra.mxu0 0.0
    %484 = vmatprep.subr.mxu0 0.0
    %485 = vmatpush1.msra.mxu0 0.0
    %486 = vmatprep.subr.mxu0 0.0
    %487 = vmatpush1.msra.mxu0 0.0
    %488 = vmatprep.subr.mxu0 0.0
    %489 = vmatpush1.msra.mxu0 0.0
    %490 = vmatprep.subr.mxu0 0.0
    %491 = vmatpush1.msra.mxu0 0.0
    %492 = vmatprep.subr.mxu0 0.0
    %493 = vmatpush1.msra.mxu0 0.0
    %494 = vmatprep.subr.mxu0 0.0
    %495 = vmatpush1.msra.mxu0 0.0
    %496 = vmatprep.subr.mxu0 0.0
    %497 = vmatpush1.msra.mxu0 0.0
    %498 = vmatprep.subr.mxu0 0.0
    %499 = vmatpush1.msra.mxu0 0.0
    %500 = vmatprep.subr.mxu0 0.0
    %501 = vmatpush1.msra.mxu0 0.0
    %502 = vmatprep.subr.mxu0 0.0
    %503 = vmatpush1.msra.mxu0 0.0
    %504 = vmatprep.subr.mxu0 0.0
    %505 = vmatpush1.msra.mxu0 0.0
    %506 = vmatprep.subr.mxu0 0.0
    %507 = vmatpush1.msra.mxu0 0.0
    %508 = vmatprep.subr.mxu0 0.0
    %509 = vmatpush1.msra.mxu0 0.0
    %510 = vmatprep.subr.mxu0 0.0
    %v511 = vand.u32 %v57, 4294901760
    %512 = vmatpush1.msra.mxu0 %v511
    %513 = vmatprep.subr.mxu0 0.0
    %v514 = vand.u32 %v39, 4294901760
    %515 = vmatpush1.msra.mxu0 %v514
    %516 = vmatprep.subr.mxu0 0.0
    %517 = vmatpush2.msra.mxu0 0.0
    %518 = vmatprep.subr.mxu0 0.0
    %519 = vmatpush2.msra.mxu0 0.0
    %520 = vmatprep.subr.mxu0 0.0
    %521 = vmatpush2.msra.mxu0 0.0
    %522 = vmatprep.subr.mxu0 0.0
    %523 = vmatpush2.msra.mxu0 0.0
    %524 = vmatprep.subr.mxu0 0.0
    %525 = vmatpush2.msra.mxu0 0.0
    %526 = vmatprep.subr.mxu0 0.0
    %527 = vmatpush2.msra.mxu0 0.0
    %528 = vmatprep.subr.mxu0 0.0
    %529 = vmatpush2.msra.mxu0 0.0
    %530 = vmatprep.subr.mxu0 0.0
    %531 = vmatpush2.msra.mxu0 0.0
    %532 = vmatprep.subr.mxu0 0.0
    %533 = vmatpush2.msra.mxu0 0.0
    %534 = vmatprep.subr.mxu0 0.0
    %535 = vmatpush2.msra.mxu0 0.0
    %536 = vmatprep.subr.mxu0 0.0
    %537 = vmatpush2.msra.mxu0 0.0
    %538 = vmatprep.subr.mxu0 0.0
    %539 = vmatpush2.msra.mxu0 0.0
    %540 = vmatprep.subr.mxu0 0.0
    %541 = vmatpush2.msra.mxu0 0.0
    %542 = vmatprep.subr.mxu0 0.0
    %543 = vmatpush2.msra.mxu0 0.0
    %544 = vmatprep.subr.mxu0 0.0
    %545 = vmatpush2.msra.mxu0 0.0
    %546 = vmatprep.subr.mxu0 0.0
    %547 = vmatpush2.msra.mxu0 0.0
    %548 = vmatprep.mubr.f32.mxu0 0.0
    %v549 = vand.u32 %v50, 4294901760
    %550 = vmatmul.mubr.f32.gmra.mxu0 %v549
    %v551 = vpop.f32.mrf.mxu0
    %v552 = vadd.f32 %v473, %v551
    %v553 = vpop.f32.mrf.mxu0
    %554 = vmatprep.mubr.f32.mxu0 0.0
    %v555 = vand.u32 %v53, 4294901760
    %556 = vmatmul.mubr.f32.gmra.mxu0 %v555
    %v557 = vpop.f32.mrf.mxu0
    %v558 = vadd.f32 %v479, %v557
    %v559 = vpop.f32.mrf.mxu0
    %560 = vdwg.mxu0
    %v561 = vmax.f32 %v552, 0.0
    %v562 = vmax.f32 %v558, 0.0
    %v563 = vlaneseq
    %v564 = vshrl.u32 %v563, 7
    %v565 = vsub.s32 1, %v564
    %v566 = vrot.slane %v41, %v565
    %vm568 = vcmask 1042432
    %v569 = vrot.slane %v40, 5
    %v570 = vrot.slane %v41, 5
    %v571 = vsel %vm568, %v569, %v570
    %vm572 = vcmask 31744
    %v574 = vsel %vm572, %v561, 0
    %v577 = vsel %vm572, %v562, 0
    %v579 = vsel %vm55, %v571, 0
    %581 = vmatprep.subr.mxu0 0.0
    %582 = vmatpush1.msra.mxu0 0.0
    %583 = vmatprep.subr.mxu0 0.0
    %584 = vmatpush1.msra.mxu0 0.0
    %585 = vmatprep.subr.mxu0 0.0
    %586 = vmatpush1.msra.mxu0 0.0
    %587 = vmatprep.subr.mxu0 0.0
    %588 = vmatpush1.msra.mxu0 0.0
    %589 = vmatprep.subr.mxu0 0.0
    %590 = vmatpush1.msra.mxu0 0.0
    %591 = vmatprep.subr.mxu0 0.0
    %592 = vmatpush1.msra.mxu0 0.0
    %593 = vmatprep.subr.mxu0 0.0
    %594 = vmatpush1.msra.mxu0 0.0
    %595 = vmatprep.subr.mxu0 0.0
    %596 = vmatpush1.msra.mxu0 0.0
    %597 = vmatprep.subr.mxu0 0.0
    %598 = vmatpush1.msra.mxu0 0.0
    %599 = vmatprep.subr.mxu0 0.0
    %600 = vmatpush1.msra.mxu0 0.0
    %601 = vmatprep.subr.mxu0 0.0
    %602 = vmatpush1.msra.mxu0 0.0
    %603 = vmatprep.subr.mxu0 0.0
    %604 = vmatpush1.msra.mxu0 0.0
    %605 = vmatprep.subr.mxu0 0.0
    %606 = vmatpush1.msra.mxu0 0.0
    %607 = vmatprep.subr.mxu0 0.0
    %608 = vmatpush1.msra.mxu0 0.0
    %609 = vmatprep.subr.mxu0 0.0
    %610 = vmatpush1.msra.mxu0 0.0
    %611 = vmatprep.subr.mxu0 0.0
    %v612 = vand.u32 %v579, 4294901760
    %613 = vmatpush1.msra.mxu0 %v612
    %614 = vmatprep.subr.mxu0 0.0
    %615 = vmatpush2.msra.mxu0 0.0
    %616 = vmatprep.subr.mxu0 0.0
    %617 = vmatpush2.msra.mxu0 0.0
    %618 = vmatprep.subr.mxu0 0.0
    %619 = vmatpush2.msra.mxu0 0.0
    %620 = vmatprep.subr.mxu0 0.0
    %621 = vmatpush2.msra.mxu0 0.0
    %622 = vmatprep.subr.mxu0 0.0
    %623 = vmatpush2.msra.mxu0 0.0
    %624 = vmatprep.subr.mxu0 0.0
    %625 = vmatpush2.msra.mxu0 0.0
    %626 = vmatprep.subr.mxu0 0.0
    %627 = vmatpush2.msra.mxu0 0.0
    %628 = vmatprep.subr.mxu0 0.0
    %629 = vmatpush2.msra.mxu0 0.0
    %630 = vmatprep.subr.mxu0 0.0
    %631 = vmatpush2.msra.mxu0 0.0
    %632 = vmatprep.subr.mxu0 0.0
    %633 = vmatpush2.msra.mxu0 0.0
    %634 = vmatprep.subr.mxu0 0.0
    %635 = vmatpush2.msra.mxu0 0.0
    %636 = vmatprep.subr.mxu0 0.0
    %637 = vmatpush2.msra.mxu0 0.0
    %638 = vmatprep.subr.mxu0 0.0
    %639 = vmatpush2.msra.mxu0 0.0
    %640 = vmatprep.subr.mxu0 0.0
    %641 = vmatpush2.msra.mxu0 0.0
    %642 = vmatprep.subr.mxu0 0.0
    %643 = vmatpush2.msra.mxu0 0.0
    %644 = vmatprep.subr.mxu0 0.0
    %645 = vmatpush2.msra.mxu0 0.0
    %646 = vmatprep.mubr.f32.mxu0 0.0
    %v647 = vand.u32 %v574, 4294901760
    %v648 = vsub.f32 %v574, %v647
    %v649 = vand.u32 %v648, 4294901760
    %v650 = vsub.f32 %v648, %v649
    %v651 = vand.u32 %v650, 4294901760
    %652 = vmatmul.mubr.f32.gmra.mxu0 %v651
    %v653 = vpop.f32.mrf.mxu0
    %v654 = vadd.f32 %v566, %v653
    %v655 = vpop.f32.mrf.mxu0
    %656 = vmatprep.mubr.f32.mxu0 0.0
    %v657 = vand.u32 %v577, 4294901760
    %v658 = vsub.f32 %v577, %v657
    %v659 = vand.u32 %v658, 4294901760
    %v660 = vsub.f32 %v658, %v659
    %v661 = vand.u32 %v660, 4294901760
    %662 = vmatmul.mubr.f32.gmra.mxu0 %v661
    %v663 = vpop.f32.mrf.mxu0
    %v664 = vadd.f32 %v566, %v663
    %v665 = vpop.f32.mrf.mxu0
    %666 = vdwg.mxu0
    %667 = vmatprep.subr.mxu0 0.0
    %668 = vmatpush1.msra.mxu0 0.0
    %669 = vmatprep.subr.mxu0 0.0
    %670 = vmatpush1.msra.mxu0 0.0
    %671 = vmatprep.subr.mxu0 0.0
    %672 = vmatpush1.msra.mxu0 0.0
    %673 = vmatprep.subr.mxu0 0.0
    %674 = vmatpush1.msra.mxu0 0.0
    %675 = vmatprep.subr.mxu0 0.0
    %676 = vmatpush1.msra.mxu0 0.0
    %677 = vmatprep.subr.mxu0 0.0
    %678 = vmatpush1.msra.mxu0 0.0
    %679 = vmatprep.subr.mxu0 0.0
    %680 = vmatpush1.msra.mxu0 0.0
    %681 = vmatprep.subr.mxu0 0.0
    %682 = vmatpush1.msra.mxu0 0.0
    %683 = vmatprep.subr.mxu0 0.0
    %684 = vmatpush1.msra.mxu0 0.0
    %685 = vmatprep.subr.mxu0 0.0
    %686 = vmatpush1.msra.mxu0 0.0
    %687 = vmatprep.subr.mxu0 0.0
    %688 = vmatpush1.msra.mxu0 0.0
    %689 = vmatprep.subr.mxu0 0.0
    %690 = vmatpush1.msra.mxu0 0.0
    %691 = vmatprep.subr.mxu0 0.0
    %692 = vmatpush1.msra.mxu0 0.0
    %693 = vmatprep.subr.mxu0 0.0
    %694 = vmatpush1.msra.mxu0 0.0
    %695 = vmatprep.subr.mxu0 0.0
    %696 = vmatpush1.msra.mxu0 0.0
    %697 = vmatprep.subr.mxu0 0.0
    %v698 = vand.u32 %v579, 4294901760
    %v699 = vsub.f32 %v579, %v698
    %v700 = vand.u32 %v699, 4294901760
    %v701 = vsub.f32 %v699, %v700
    %v702 = vand.u32 %v701, 4294901760
    %703 = vmatpush1.msra.mxu0 %v702
    %704 = vmatprep.subr.mxu0 0.0
    %705 = vmatpush2.msra.mxu0 0.0
    %706 = vmatprep.subr.mxu0 0.0
    %707 = vmatpush2.msra.mxu0 0.0
    %708 = vmatprep.subr.mxu0 0.0
    %709 = vmatpush2.msra.mxu0 0.0
    %710 = vmatprep.subr.mxu0 0.0
    %711 = vmatpush2.msra.mxu0 0.0
    %712 = vmatprep.subr.mxu0 0.0
    %713 = vmatpush2.msra.mxu0 0.0
    %714 = vmatprep.subr.mxu0 0.0
    %715 = vmatpush2.msra.mxu0 0.0
    %716 = vmatprep.subr.mxu0 0.0
    %717 = vmatpush2.msra.mxu0 0.0
    %718 = vmatprep.subr.mxu0 0.0
    %719 = vmatpush2.msra.mxu0 0.0
    %720 = vmatprep.subr.mxu0 0.0
    %721 = vmatpush2.msra.mxu0 0.0
    %722 = vmatprep.subr.mxu0 0.0
    %723 = vmatpush2.msra.mxu0 0.0
    %724 = vmatprep.subr.mxu0 0.0
    %725 = vmatpush2.msra.mxu0 0.0
    %726 = vmatprep.subr.mxu0 0.0
    %727 = vmatpush2.msra.mxu0 0.0
    %728 = vmatprep.subr.mxu0 0.0
    %729 = vmatpush2.msra.mxu0 0.0
    %730 = vmatprep.subr.mxu0 0.0
    %731 = vmatpush2.msra.mxu0 0.0
    %732 = vmatprep.subr.mxu0 0.0
    %733 = vmatpush2.msra.mxu0 0.0
    %734 = vmatprep.subr.mxu0 0.0
    %735 = vmatpush2.msra.mxu0 0.0
    %736 = vmatprep.mubr.f32.mxu0 0.0
    %v737 = vand.u32 %v574, 4294901760
    %738 = vmatmul.mubr.f32.gmra.mxu0 %v737
    %v739 = vpop.f32.mrf.mxu0
    %v740 = vadd.f32 %v654, %v739
    %v741 = vpop.f32.mrf.mxu0
    %742 = vmatprep.mubr.f32.mxu0 0.0
    %v743 = vand.u32 %v577, 4294901760
    %744 = vmatmul.mubr.f32.gmra.mxu0 %v743
    %v745 = vpop.f32.mrf.mxu0
    %v746 = vadd.f32 %v664, %v745
    %v747 = vpop.f32.mrf.mxu0
    %748 = vdwg.mxu0
    %749 = vmatprep.subr.mxu0 0.0
    %750 = vmatpush1.msra.mxu0 0.0
    %751 = vmatprep.subr.mxu0 0.0
    %752 = vmatpush1.msra.mxu0 0.0
    %753 = vmatprep.subr.mxu0 0.0
    %754 = vmatpush1.msra.mxu0 0.0
    %755 = vmatprep.subr.mxu0 0.0
    %756 = vmatpush1.msra.mxu0 0.0
    %757 = vmatprep.subr.mxu0 0.0
    %758 = vmatpush1.msra.mxu0 0.0
    %759 = vmatprep.subr.mxu0 0.0
    %760 = vmatpush1.msra.mxu0 0.0
    %761 = vmatprep.subr.mxu0 0.0
    %762 = vmatpush1.msra.mxu0 0.0
    %763 = vmatprep.subr.mxu0 0.0
    %764 = vmatpush1.msra.mxu0 0.0
    %765 = vmatprep.subr.mxu0 0.0
    %766 = vmatpush1.msra.mxu0 0.0
    %767 = vmatprep.subr.mxu0 0.0
    %768 = vmatpush1.msra.mxu0 0.0
    %769 = vmatprep.subr.mxu0 0.0
    %770 = vmatpush1.msra.mxu0 0.0
    %771 = vmatprep.subr.mxu0 0.0
    %772 = vmatpush1.msra.mxu0 0.0
    %773 = vmatprep.subr.mxu0 0.0
    %774 = vmatpush1.msra.mxu0 0.0
    %775 = vmatprep.subr.mxu0 0.0
    %776 = vmatpush1.msra.mxu0 0.0
    %777 = vmatprep.subr.mxu0 0.0
    %778 = vmatpush1.msra.mxu0 0.0
    %779 = vmatprep.subr.mxu0 0.0
    %v780 = vand.u32 %v579, 4294901760
    %v781 = vsub.f32 %v579, %v780
    %782 = vmatpush1.msra.mxu0 %v781
    %783 = vmatprep.subr.mxu0 0.0
    %784 = vmatpush2.msra.mxu0 0.0
    %785 = vmatprep.subr.mxu0 0.0
    %786 = vmatpush2.msra.mxu0 0.0
    %787 = vmatprep.subr.mxu0 0.0
    %788 = vmatpush2.msra.mxu0 0.0
    %789 = vmatprep.subr.mxu0 0.0
    %790 = vmatpush2.msra.mxu0 0.0
    %791 = vmatprep.subr.mxu0 0.0
    %792 = vmatpush2.msra.mxu0 0.0
    %793 = vmatprep.subr.mxu0 0.0
    %794 = vmatpush2.msra.mxu0 0.0
    %795 = vmatprep.subr.mxu0 0.0
    %796 = vmatpush2.msra.mxu0 0.0
    %797 = vmatprep.subr.mxu0 0.0
    %798 = vmatpush2.msra.mxu0 0.0
    %799 = vmatprep.subr.mxu0 0.0
    %800 = vmatpush2.msra.mxu0 0.0
    %801 = vmatprep.subr.mxu0 0.0
    %802 = vmatpush2.msra.mxu0 0.0
    %803 = vmatprep.subr.mxu0 0.0
    %804 = vmatpush2.msra.mxu0 0.0
    %805 = vmatprep.subr.mxu0 0.0
    %806 = vmatpush2.msra.mxu0 0.0
    %807 = vmatprep.subr.mxu0 0.0
    %808 = vmatpush2.msra.mxu0 0.0
    %809 = vmatprep.subr.mxu0 0.0
    %810 = vmatpush2.msra.mxu0 0.0
    %811 = vmatprep.subr.mxu0 0.0
    %812 = vmatpush2.msra.mxu0 0.0
    %813 = vmatprep.subr.mxu0 0.0
    %814 = vmatpush2.msra.mxu0 0.0
    %815 = vmatprep.mubr.f32.mxu0 0.0
    %v816 = vand.u32 %v574, 4294901760
    %v817 = vsub.f32 %v574, %v816
    %818 = vmatmul.mubr.f32.gmra.mxu0 %v817
    %v819 = vpop.f32.mrf.mxu0
    %v820 = vadd.f32 %v740, %v819
    %v821 = vpop.f32.mrf.mxu0
    %822 = vmatprep.mubr.f32.mxu0 0.0
    %v823 = vand.u32 %v577, 4294901760
    %v824 = vsub.f32 %v577, %v823
    %825 = vmatmul.mubr.f32.gmra.mxu0 %v824
    %v826 = vpop.f32.mrf.mxu0
    %v827 = vadd.f32 %v746, %v826
    %v828 = vpop.f32.mrf.mxu0
    %829 = vdwg.mxu0
    %830 = vmatprep.subr.mxu0 0.0
    %831 = vmatpush1.msra.mxu0 0.0
    %832 = vmatprep.subr.mxu0 0.0
    %833 = vmatpush1.msra.mxu0 0.0
    %834 = vmatprep.subr.mxu0 0.0
    %835 = vmatpush1.msra.mxu0 0.0
    %836 = vmatprep.subr.mxu0 0.0
    %837 = vmatpush1.msra.mxu0 0.0
    %838 = vmatprep.subr.mxu0 0.0
    %839 = vmatpush1.msra.mxu0 0.0
    %840 = vmatprep.subr.mxu0 0.0
    %841 = vmatpush1.msra.mxu0 0.0
    %842 = vmatprep.subr.mxu0 0.0
    %843 = vmatpush1.msra.mxu0 0.0
    %844 = vmatprep.subr.mxu0 0.0
    %845 = vmatpush1.msra.mxu0 0.0
    %846 = vmatprep.subr.mxu0 0.0
    %847 = vmatpush1.msra.mxu0 0.0
    %848 = vmatprep.subr.mxu0 0.0
    %849 = vmatpush1.msra.mxu0 0.0
    %850 = vmatprep.subr.mxu0 0.0
    %851 = vmatpush1.msra.mxu0 0.0
    %852 = vmatprep.subr.mxu0 0.0
    %853 = vmatpush1.msra.mxu0 0.0
    %854 = vmatprep.subr.mxu0 0.0
    %855 = vmatpush1.msra.mxu0 0.0
    %856 = vmatprep.subr.mxu0 0.0
    %857 = vmatpush1.msra.mxu0 0.0
    %858 = vmatprep.subr.mxu0 0.0
    %859 = vmatpush1.msra.mxu0 0.0
    %860 = vmatprep.subr.mxu0 0.0
    %v861 = vand.u32 %v579, 4294901760
    %862 = vmatpush1.msra.mxu0 %v861
    %863 = vmatprep.subr.mxu0 0.0
    %864 = vmatpush2.msra.mxu0 0.0
    %865 = vmatprep.subr.mxu0 0.0
    %866 = vmatpush2.msra.mxu0 0.0
    %867 = vmatprep.subr.mxu0 0.0
    %868 = vmatpush2.msra.mxu0 0.0
    %869 = vmatprep.subr.mxu0 0.0
    %870 = vmatpush2.msra.mxu0 0.0
    %871 = vmatprep.subr.mxu0 0.0
    %872 = vmatpush2.msra.mxu0 0.0
    %873 = vmatprep.subr.mxu0 0.0
    %874 = vmatpush2.msra.mxu0 0.0
    %875 = vmatprep.subr.mxu0 0.0
    %876 = vmatpush2.msra.mxu0 0.0
    %877 = vmatprep.subr.mxu0 0.0
    %878 = vmatpush2.msra.mxu0 0.0
    %879 = vmatprep.subr.mxu0 0.0
    %880 = vmatpush2.msra.mxu0 0.0
    %881 = vmatprep.subr.mxu0 0.0
    %882 = vmatpush2.msra.mxu0 0.0
    %883 = vmatprep.subr.mxu0 0.0
    %884 = vmatpush2.msra.mxu0 0.0
    %885 = vmatprep.subr.mxu0 0.0
    %886 = vmatpush2.msra.mxu0 0.0
    %887 = vmatprep.subr.mxu0 0.0
    %888 = vmatpush2.msra.mxu0 0.0
    %889 = vmatprep.subr.mxu0 0.0
    %890 = vmatpush2.msra.mxu0 0.0
    %891 = vmatprep.subr.mxu0 0.0
    %892 = vmatpush2.msra.mxu0 0.0
    %893 = vmatprep.subr.mxu0 0.0
    %894 = vmatpush2.msra.mxu0 0.0
    %895 = vmatprep.mubr.f32.mxu0 0.0
    %v896 = vand.u32 %v574, 4294901760
    %v897 = vsub.f32 %v574, %v896
    %v898 = vand.u32 %v897, 4294901760
    %899 = vmatmul.mubr.f32.gmra.mxu0 %v898
    %v900 = vpop.f32.mrf.mxu0
    %v901 = vadd.f32 %v820, %v900
    %v902 = vpop.f32.mrf.mxu0
    %903 = vmatprep.mubr.f32.mxu0 0.0
    %v904 = vand.u32 %v577, 4294901760
    %v905 = vsub.f32 %v577, %v904
    %v906 = vand.u32 %v905, 4294901760
    %907 = vmatmul.mubr.f32.gmra.mxu0 %v906
    %v908 = vpop.f32.mrf.mxu0
    %v909 = vadd.f32 %v827, %v908
    %v910 = vpop.f32.mrf.mxu0
    %911 = vdwg.mxu0
    %912 = vmatprep.subr.mxu0 0.0
    %913 = vmatpush1.msra.mxu0 0.0
    %914 = vmatprep.subr.mxu0 0.0
    %915 = vmatpush1.msra.mxu0 0.0
    %916 = vmatprep.subr.mxu0 0.0
    %917 = vmatpush1.msra.mxu0 0.0
    %918 = vmatprep.subr.mxu0 0.0
    %919 = vmatpush1.msra.mxu0 0.0
    %920 = vmatprep.subr.mxu0 0.0
    %921 = vmatpush1.msra.mxu0 0.0
    %922 = vmatprep.subr.mxu0 0.0
    %923 = vmatpush1.msra.mxu0 0.0
    %924 = vmatprep.subr.mxu0 0.0
    %925 = vmatpush1.msra.mxu0 0.0
    %926 = vmatprep.subr.mxu0 0.0
    %927 = vmatpush1.msra.mxu0 0.0
    %928 = vmatprep.subr.mxu0 0.0
    %929 = vmatpush1.msra.mxu0 0.0
    %930 = vmatprep.subr.mxu0 0.0
    %931 = vmatpush1.msra.mxu0 0.0
    %932 = vmatprep.subr.mxu0 0.0
    %933 = vmatpush1.msra.mxu0 0.0
    %934 = vmatprep.subr.mxu0 0.0
    %935 = vmatpush1.msra.mxu0 0.0
    %936 = vmatprep.subr.mxu0 0.0
    %937 = vmatpush1.msra.mxu0 0.0
    %938 = vmatprep.subr.mxu0 0.0
    %939 = vmatpush1.msra.mxu0 0.0
    %940 = vmatprep.subr.mxu0 0.0
    %941 = vmatpush1.msra.mxu0 0.0
    %942 = vmatprep.subr.mxu0 0.0
    %v943 = vand.u32 %v579, 4294901760
    %v944 = vsub.f32 %v579, %v943
    %v945 = vand.u32 %v944, 4294901760
    %946 = vmatpush1.msra.mxu0 %v945
    %947 = vmatprep.subr.mxu0 0.0
    %948 = vmatpush2.msra.mxu0 0.0
    %949 = vmatprep.subr.mxu0 0.0
    %950 = vmatpush2.msra.mxu0 0.0
    %951 = vmatprep.subr.mxu0 0.0
    %952 = vmatpush2.msra.mxu0 0.0
    %953 = vmatprep.subr.mxu0 0.0
    %954 = vmatpush2.msra.mxu0 0.0
    %955 = vmatprep.subr.mxu0 0.0
    %956 = vmatpush2.msra.mxu0 0.0
    %957 = vmatprep.subr.mxu0 0.0
    %958 = vmatpush2.msra.mxu0 0.0
    %959 = vmatprep.subr.mxu0 0.0
    %960 = vmatpush2.msra.mxu0 0.0
    %961 = vmatprep.subr.mxu0 0.0
    %962 = vmatpush2.msra.mxu0 0.0
    %963 = vmatprep.subr.mxu0 0.0
    %964 = vmatpush2.msra.mxu0 0.0
    %965 = vmatprep.subr.mxu0 0.0
    %966 = vmatpush2.msra.mxu0 0.0
    %967 = vmatprep.subr.mxu0 0.0
    %968 = vmatpush2.msra.mxu0 0.0
    %969 = vmatprep.subr.mxu0 0.0
    %970 = vmatpush2.msra.mxu0 0.0
    %971 = vmatprep.subr.mxu0 0.0
    %972 = vmatpush2.msra.mxu0 0.0
    %973 = vmatprep.subr.mxu0 0.0
    %974 = vmatpush2.msra.mxu0 0.0
    %975 = vmatprep.subr.mxu0 0.0
    %976 = vmatpush2.msra.mxu0 0.0
    %977 = vmatprep.subr.mxu0 0.0
    %978 = vmatpush2.msra.mxu0 0.0
    %979 = vmatprep.mubr.f32.mxu0 0.0
    %v980 = vand.u32 %v574, 4294901760
    %981 = vmatmul.mubr.f32.gmra.mxu0 %v980
    %v982 = vpop.f32.mrf.mxu0
    %v983 = vadd.f32 %v901, %v982
    %v984 = vpop.f32.mrf.mxu0
    %985 = vmatprep.mubr.f32.mxu0 0.0
    %v986 = vand.u32 %v577, 4294901760
    %987 = vmatmul.mubr.f32.gmra.mxu0 %v986
    %v988 = vpop.f32.mrf.mxu0
    %v989 = vadd.f32 %v909, %v988
    %v990 = vpop.f32.mrf.mxu0
    %991 = vdwg.mxu0
    %992 = vmatprep.subr.mxu0 0.0
    %993 = vmatpush1.msra.mxu0 0.0
    %994 = vmatprep.subr.mxu0 0.0
    %995 = vmatpush1.msra.mxu0 0.0
    %996 = vmatprep.subr.mxu0 0.0
    %997 = vmatpush1.msra.mxu0 0.0
    %998 = vmatprep.subr.mxu0 0.0
    %999 = vmatpush1.msra.mxu0 0.0
    %1000 = vmatprep.subr.mxu0 0.0
    %1001 = vmatpush1.msra.mxu0 0.0
    %1002 = vmatprep.subr.mxu0 0.0
    %1003 = vmatpush1.msra.mxu0 0.0
    %1004 = vmatprep.subr.mxu0 0.0
    %1005 = vmatpush1.msra.mxu0 0.0
    %1006 = vmatprep.subr.mxu0 0.0
    %1007 = vmatpush1.msra.mxu0 0.0
    %1008 = vmatprep.subr.mxu0 0.0
    %1009 = vmatpush1.msra.mxu0 0.0
    %1010 = vmatprep.subr.mxu0 0.0
    %1011 = vmatpush1.msra.mxu0 0.0
    %1012 = vmatprep.subr.mxu0 0.0
    %1013 = vmatpush1.msra.mxu0 0.0
    %1014 = vmatprep.subr.mxu0 0.0
    %1015 = vmatpush1.msra.mxu0 0.0
    %1016 = vmatprep.subr.mxu0 0.0
    %1017 = vmatpush1.msra.mxu0 0.0
    %1018 = vmatprep.subr.mxu0 0.0
    %1019 = vmatpush1.msra.mxu0 0.0
    %1020 = vmatprep.subr.mxu0 0.0
    %1021 = vmatpush1.msra.mxu0 0.0
    %1022 = vmatprep.subr.mxu0 0.0
    %v1023 = vand.u32 %v579, 4294901760
    %1024 = vmatpush1.msra.mxu0 %v1023
    %1025 = vmatprep.subr.mxu0 0.0
    %1026 = vmatpush2.msra.mxu0 0.0
    %1027 = vmatprep.subr.mxu0 0.0
    %1028 = vmatpush2.msra.mxu0 0.0
    %1029 = vmatprep.subr.mxu0 0.0
    %1030 = vmatpush2.msra.mxu0 0.0
    %1031 = vmatprep.subr.mxu0 0.0
    %1032 = vmatpush2.msra.mxu0 0.0
    %1033 = vmatprep.subr.mxu0 0.0
    %1034 = vmatpush2.msra.mxu0 0.0
    %1035 = vmatprep.subr.mxu0 0.0
    %1036 = vmatpush2.msra.mxu0 0.0
    %1037 = vmatprep.subr.mxu0 0.0
    %1038 = vmatpush2.msra.mxu0 0.0
    %1039 = vmatprep.subr.mxu0 0.0
    %1040 = vmatpush2.msra.mxu0 0.0
    %1041 = vmatprep.subr.mxu0 0.0
    %1042 = vmatpush2.msra.mxu0 0.0
    %1043 = vmatprep.subr.mxu0 0.0
    %1044 = vmatpush2.msra.mxu0 0.0
    %1045 = vmatprep.subr.mxu0 0.0
    %1046 = vmatpush2.msra.mxu0 0.0
    %1047 = vmatprep.subr.mxu0 0.0
    %1048 = vmatpush2.msra.mxu0 0.0
    %1049 = vmatprep.subr.mxu0 0.0
    %1050 = vmatpush2.msra.mxu0 0.0
    %1051 = vmatprep.subr.mxu0 0.0
    %1052 = vmatpush2.msra.mxu0 0.0
    %1053 = vmatprep.subr.mxu0 0.0
    %1054 = vmatpush2.msra.mxu0 0.0
    %1055 = vmatprep.subr.mxu0 0.0
    %1056 = vmatpush2.msra.mxu0 0.0
    %1057 = vmatprep.mubr.f32.mxu0 0.0
    %v1058 = vand.u32 %v574, 4294901760
    %1059 = vmatmul.mubr.f32.gmra.mxu0 %v1058
    %v1060 = vpop.f32.mrf.mxu0
    %v1061 = vadd.f32 %v983, %v1060
    %v1062 = vpop.f32.mrf.mxu0
    %1063 = vmatprep.mubr.f32.mxu0 0.0
    %v1064 = vand.u32 %v577, 4294901760
    %1065 = vmatmul.mubr.f32.gmra.mxu0 %v1064
    %v1066 = vpop.f32.mrf.mxu0
    %v1067 = vadd.f32 %v989, %v1066
    %v1068 = vpop.f32.mrf.mxu0
    %1069 = vdwg.mxu0
    %vm1070 = vcmask 195584
    %1071 = vst.msk [vmem:[%s2] sm:$0xff] %vm1070, %v1061
    %1072 = vst.msk [vmem:[%s2 + $0x8] sm:$0xff] %vm1070, %v1067
    // Predicated region
    $region18: #{seasonality_block_forward.1} parent=1 // pred_check
      _
    $region19: #{seasonality_block_forward.1} parent=1 // pred_check_branch
      %1074 = sbr.rel (0) target = $region21
    $region20: #{seasonality_block_forward.1} parent=1 // pred_region
      _
    $region21: #{seasonality_block_forward.1} parent=1 // pred_fallthru
      _
    // Predicated region
    $region22: #{seasonality_block_forward.1} parent=1 // pred_check
      _
    $region23: #{seasonality_block_forward.1} parent=1 // pred_check_branch
      %1076 = sbr.rel (0) target = $region25
    $region24: #{seasonality_block_forward.1} parent=1 // pred_region
      _
    $region25: #{seasonality_block_forward.1} parent=1 // pred_fallthru
      _
    %1077 = vsyncpa [#allocation3], 1
    %1078 = vsyncpa [#allocation5], 1

</llo_original>
